<compile_context>
chip_gen: v7x
topology: tpu7x:2x2x1
jax: 0.10.0
libtpu: 0.0.40
codegen_flags: <defaults>
</compile_context>

<pallas_src>
import functools

import jax
import jax.numpy as jnp
from jax.experimental import pallas as pl
from jax.experimental.pallas import tpu as pltpu


# ----------------------------------------------------------------------------
# Tiling configuration / helpers
# ----------------------------------------------------------------------------
_INNER_COLS = 4096                 # lane sub-chunk: caps the (HIDDEN, .) temp
_MAX_TILE_COLS = 64 * 1024         # default column-tile cap for the model
_MAX_LOSS_TILE_COLS = 32 * 1024    # default column-tile cap for the loss
_VMEM_LIMIT_BYTES = 32 * 1024 * 1024   # satisfiable on v5e/v6e/v7x
_VMEM_TILE_BUDGET = 20 * 1024 * 1024   # per-tile HBM-facing byte budget


def _round_up(x, m):
    return ((x + m - 1) // m) * m


def _clamp_by_vmem(max_cols, bytes_per_col, budget=_VMEM_TILE_BUDGET):
    """Cap the column tile so double-buffered HBM-facing traffic fits VMEM."""
    cols = int(budget // max(int(bytes_per_col), 1))
    cols = max(128, (cols // 128) * 128)
    return min(max_cols, cols)


def _pick_tile_cols(total, max_cols):
    """Lane-aligned (multiple of 128) column tile, bounded by max_cols.

    If `total` rounded up to 128 fits under the cap, use that (single tile per
    sample).  Otherwise prefer a 128-multiple divisor of the rounded extent;
    failing that, return the bounded cap (the wrapper pads to a tile multiple
    and the kernel masks the tail out of any reduction)."""
    max_cols = max(128, (max_cols // 128) * 128)
    tp = _round_up(total, 128)
    if tp <= max_cols:
        return tp
    for cand in range(max_cols, 0, -128):
        if tp % cand == 0:
            return cand
    return max_cols


def _make_chunks(tile_cols, inner=_INNER_COLS):
    """Static partition of a tile into lane sub-chunks (each a mult. of 128)."""
    chunks = []
    off = 0
    while off < tile_cols:
        size = min(inner, tile_cols - off)
        chunks.append((off, size))
        off += size
    return tuple(chunks)


# ----------------------------------------------------------------------------
# In-kernel compute: per-pixel MLP with pixels on the lane axis
# ----------------------------------------------------------------------------
def _pixel_mlp(x, w1t_ref, b1_ref, w2t_ref, b2_ref):
    """x: (C, S) f32 pixels-on-lanes -> (J, S) f32.

    Layer 1 (K=C, tiny) as VPU broadcast-multiply-accumulate; layer 2
    (K=HIDDEN) on the MXU.  Output stays lane-dense (pixels on lanes)."""
    cin = x.shape[0]
    h = w1t_ref[:, 0:1] * x[0:1, :]                        # (HIDDEN, S)
    for ci in range(1, cin):
        h = h + w1t_ref[:, ci:ci + 1] * x[ci:ci + 1, :]
    h = jnp.maximum(h + b1_ref[...], 0.0)
    out = jnp.dot(w2t_ref[...], h, preferred_element_type=jnp.float32)
    return out + b2_ref[...]                               # (J, S)


# ----------------------------------------------------------------------------
# Pallas kernels
# ----------------------------------------------------------------------------
def _pose_eval_kernel(x_ref, w1t_ref, b1_ref, w2t_ref, b2_ref, pred_ref, *,
                      chunks):
    """Eval path: one sample x one column tile -> predictions only."""
    for off, size in chunks:
        x = x_ref[0, :, off:off + size].astype(jnp.float32)
        out = _pixel_mlp(x, w1t_ref, b1_ref, w2t_ref, b2_ref)
        pred_ref[0, :, off:off + size] = out.astype(pred_ref.dtype)


def _pose_train_kernel(x_ref, w1t_ref, b1_ref, w2t_ref, b2_ref, gt_ref,
                       pred_ref, loss_ref, acc_ref, *,
                       inv_total, chunks, valid_cols, mask_tail):
    """Fused model + per-sample heatmap MSE.

    Grid = (N, num_col_tiles); the column axis is the per-sample reduction
    axis ("arbitrary"); the batch axis is "parallel" (per-sample loss block +
    per-core acc scratch make this race-free, incl. v7x megacore).
    acc_ref: VMEM (1,1) running squared-error sum for the current sample.
    loss_ref: per-sample (1,1,128) lane-dense block, written on the sample's
    last column tile."""
    c = pl.program_id(1)

    @pl.when(c == 0)
    def _():
        acc_ref[...] = jnp.zeros_like(acc_ref)

    tile_cols = pred_ref.shape[-1]
    col0 = c * tile_cols
    for off, size in chunks:
        x = x_ref[0, :, off:off + size].astype(jnp.float32)      # (C, S)
        out = _pixel_mlp(x, w1t_ref, b1_ref, w2t_ref, b2_ref)    # (J, S)
        pred_ref[0, :, off:off + size] = out.astype(pred_ref.dtype)

        # Cast gt to f32 per-tile inside the kernel (no wrapper-side copy).
        d = out - gt_ref[0, :, off:off + size].astype(jnp.float32)
        if mask_tail:
            col = col0 + off + jax.lax.broadcasted_iota(jnp.int32, d.shape, 1)
            d = jnp.where(col < valid_cols, d, 0.0)
        part = jnp.sum(d * d, axis=-1, keepdims=True)            # (J, 1)
        acc_ref[...] += jnp.sum(part, axis=0, keepdims=True)     # (1, 1)

    @pl.when(c == pl.num_programs(1) - 1)
    def _():
        val = acc_ref[...] * inv_total                           # (1, 1)
        loss_ref[...] = jnp.broadcast_to(val[:, :, None], loss_ref.shape)


def _mse_kernel(p_ref, g_ref, o_ref, acc_ref, *, inv_total):
    """Standalone per-sample heatmap MSE, tiled along the reduction axis.
    Both operands are zero-padded to the tile multiple in the wrapper, so the
    padded columns contribute exactly zero and need no mask."""
    c = pl.program_id(0)

    @pl.when(c == 0)
    def _():
        acc_ref[...] = jnp.zeros_like(acc_ref)

    d = p_ref[...].astype(jnp.float32) - g_ref[...].astype(jnp.float32)
    acc_ref[...] += jnp.sum(d * d, axis=-1, keepdims=True)       # (N, 1)

    @pl.when(c == pl.num_programs(0) - 1)
    def _():
        o_ref[...] = acc_ref[...] * inv_total


# ----------------------------------------------------------------------------
# Wrappers around pallas_call
# ----------------------------------------------------------------------------
def pose_model_forward(imgs, params, *, max_tile_cols=_MAX_TILE_COLS,
                       pred_dtype=None):
    """Synthetic pose head, eval path.  imgs: [N,C,H,W] -> preds [N,J,H,W]."""
    w1t, b1, w2t, b2 = params
    N, C, H, W = imgs.shape
    J = w2t.shape[0]
    HW = H * W
    pred_dtype = imgs.dtype if pred_dtype is None else jnp.dtype(pred_dtype)

    bytes_per_col = 2 * (C * imgs.dtype.itemsize
                         + J * jnp.dtype(pred_dtype).itemsize)
    tc = _pick_tile_cols(HW, _clamp_by_vmem(max_tile_cols, bytes_per_col))
    hw_pad = _round_up(HW, tc)

    x = imgs.reshape(N, C, HW)                   # free reshape, no transpose
    if hw_pad != HW:
        x = jnp.pad(x, ((0, 0), (0, 0), (0, hw_pad - HW)))

    kernel = functools.partial(_pose_eval_kernel, chunks=_make_chunks(tc))
    # TODO(synk): optionally sweep pipeline_mode=pl.Buffered(3) on the x spec.
    pred = pl.pallas_call(
        kernel,
        out_shape=jax.ShapeDtypeStruct((N, J, hw_pad), pred_dtype),
        grid_spec=pltpu.PrefetchScalarGridSpec(
            num_scalar_prefetch=0,
            grid=(N, hw_pad // tc),
            in_specs=[
                pl.BlockSpec((1, C, tc), lambda n, c: (n, 0, c)),
                pl.BlockSpec(w1t.shape, lambda n, c: (0, 0)),
                pl.BlockSpec(b1.shape, lambda n, c: (0, 0)),
                pl.BlockSpec(w2t.shape, lambda n, c: (0, 0)),
                pl.BlockSpec(b2.shape, lambda n, c: (0, 0)),
            ],
            out_specs=pl.BlockSpec((1, J, tc), lambda n, c: (n, 0, c)),
        ),
        compiler_params=pltpu.CompilerParams(
            dimension_semantics=("parallel", "parallel"),
            vmem_limit_bytes=_VMEM_LIMIT_BYTES,
        ),
    )(x, w1t, b1, w2t, b2)

    if hw_pad != HW:
        pred = pred[:, :, :HW]
    return pred.reshape(N, J, H, W)              # free reshape back to NCHW


def pose_model_forward_with_loss(imgs, heatmaps, params, *,
                                 max_tile_cols=_MAX_TILE_COLS,
                                 pred_dtype=None):
    """Fused training path: preds [N,J,H,W] and per-sample MSE loss (N,1)."""
    w1t, b1, w2t, b2 = params
    N, C, H, W = imgs.shape
    J = w2t.shape[0]
    HW = H * W
    pred_dtype = imgs.dtype if pred_dtype is None else jnp.dtype(pred_dtype)

    bytes_per_col = 2 * (C * imgs.dtype.itemsize
                         + J * heatmaps.dtype.itemsize
                         + J * jnp.dtype(pred_dtype).itemsize)
    tc = _pick_tile_cols(HW, _clamp_by_vmem(max_tile_cols, bytes_per_col))
    hw_pad = _round_up(HW, tc)

    x = imgs.reshape(N, C, HW)
    gt = heatmaps.reshape(N, J, HW)              # no wrapper cast (in-kernel)
    if hw_pad != HW:
        x = jnp.pad(x, ((0, 0), (0, 0), (0, hw_pad - HW)))
        gt = jnp.pad(gt, ((0, 0), (0, 0), (0, hw_pad - HW)))

    kernel = functools.partial(
        _pose_train_kernel,
        inv_total=1.0 / float(J * HW),
        chunks=_make_chunks(tc),
        valid_cols=HW,
        mask_tail=(hw_pad != HW),
    )

    pred, loss3 = pl.pallas_call(
        kernel,
        out_shape=(
            jax.ShapeDtypeStruct((N, J, hw_pad), pred_dtype),
            jax.ShapeDtypeStruct((N, 1, 128), jnp.float32),
        ),
        grid_spec=pltpu.PrefetchScalarGridSpec(
            num_scalar_prefetch=0,
            grid=(N, hw_pad // tc),
            in_specs=[
                pl.BlockSpec((1, C, tc), lambda n, c: (n, 0, c)),
                pl.BlockSpec(w1t.shape, lambda n, c: (0, 0)),
                pl.BlockSpec(b1.shape, lambda n, c: (0, 0)),
                pl.BlockSpec(w2t.shape, lambda n, c: (0, 0)),
                pl.BlockSpec(b2.shape, lambda n, c: (0, 0)),
                pl.BlockSpec((1, J, tc), lambda n, c: (n, 0, c)),
            ],
            out_specs=(
                pl.BlockSpec((1, J, tc), lambda n, c: (n, 0, c)),
                pl.BlockSpec((1, 1, 128), lambda n, c: (n, 0, 0)),
            ),
            scratch_shapes=[pltpu.VMEM((1, 1), jnp.float32)],
        ),
        compiler_params=pltpu.CompilerParams(
            # Per-sample loss blocks + per-core scratch -> batch axis can be
            # "parallel" (v7x megacore); column axis is the reduction.
            dimension_semantics=("parallel", "arbitrary"),
            vmem_limit_bytes=_VMEM_LIMIT_BYTES,
        ),
    )(x, w1t, b1, w2t, b2, gt)

    loss = loss3[:, 0, :1]                       # (N, 1)
    if hw_pad != HW:
        pred = pred[:, :, :HW]
    return pred.reshape(N, J, H, W), loss


def heatmap_loss(pred, gt, *, max_tile_cols=_MAX_LOSS_TILE_COLS):
    """HeatmapLoss: ((pred-gt)**2).mean(dim=3).mean(dim=2).mean(dim=1) -> (N,)."""
    N, J, H, W = pred.shape
    L = J * H * W
    p = pred.reshape(N, L)
    g = gt.reshape(N, L)                         # no wrapper cast (in-kernel)

    bytes_per_col = 2 * N * (p.dtype.itemsize + g.dtype.itemsize)
    tc = _pick_tile_cols(L, _clamp_by_vmem(max_tile_cols, bytes_per_col))
    l_pad = _round_up(L, tc)
    if l_pad != L:
        # Zero-pad both operands: pad columns contribute 0 to the sum.
        p = jnp.pad(p, ((0, 0), (0, l_pad - L)))
        g = jnp.pad(g, ((0, 0), (0, l_pad - L)))

    kernel = functools.partial(_mse_kernel, inv_total=1.0 / float(L))
    loss = pl.pallas_call(
        kernel,
        out_shape=jax.ShapeDtypeStruct((N, 1), jnp.float32),
        grid_spec=pltpu.PrefetchScalarGridSpec(
            num_scalar_prefetch=0,
            grid=(l_pad // tc,),
            in_specs=[
                pl.BlockSpec((N, tc), lambda c: (0, c)),
                pl.BlockSpec((N, tc), lambda c: (0, c)),
            ],
            out_specs=pl.BlockSpec((N, 1), lambda c: (0, 0)),
            scratch_shapes=[pltpu.VMEM((N, 1), jnp.float32)],
        ),
        compiler_params=pltpu.CompilerParams(
            dimension_semantics=("arbitrary",),
            vmem_limit_bytes=_VMEM_LIMIT_BYTES,
        ),
    )(p, g)
    return loss[:, 0]                            # (N,)


def calc_loss(heatmaps, combined_hm_preds):
    """Mirror of pose.py calc_loss: per-stack heatmap loss, stacked on dim=1."""
    losses = [heatmap_loss(pred, heatmaps) for pred in combined_hm_preds]
    return jnp.stack(losses, axis=1)             # (N, nstack)


# ----------------------------------------------------------------------------
# Synthetic pose model
# ----------------------------------------------------------------------------
class PoseNet:
    """Two 1x1 convs + ReLU (per-pixel MLP), Pallas-backed.  Weights are kept
    pre-transposed so the pixel axis stays on the 128-lane dimension."""

    def __init__(self, params, max_tile_cols=_MAX_TILE_COLS):
        self.params = params
        self.max_tile_cols = max_tile_cols

    def __call__(self, imgs):
        return pose_model_forward(imgs, self.params,
                                  max_tile_cols=self.max_tile_cols)

    def forward_with_loss(self, imgs, heatmaps):
        return pose_model_forward_with_loss(imgs, heatmaps, self.params,
                                            max_tile_cols=self.max_tile_cols)


# ----------------------------------------------------------------------------
# Trainer wrapper (faithful port of the PyTorch module's forward routing)
# ----------------------------------------------------------------------------
class Trainer:
    """Behaves differently for training or testing; inference_keys select the
    kwargs forwarded to the model, everything else is treated as a label."""

    def __init__(self, model, inference_keys, calc_loss=None):
        self.model = model
        self.keys = inference_keys
        self.calc_loss = calc_loss
        self.training = True

    def train(self):
        self.training = True
        return self

    def eval(self):
        self.training = False
        return self

    def forward(self, imgs, **inputs):
        inps = {}
        labels = {}
        for i in inputs:
            if i in self.keys:
                inps[i] = inputs[i]
            else:
                labels[i] = inputs[i]
        if not self.training:
            return self.model(imgs, **inps)

        # Training: use the fused model+loss kernel when available (saves a
        # full HBM round trip of the predictions); otherwise fall back to the
        # faithful model -> calc_loss two-kernel path.
        if (hasattr(self.model, "forward_with_loss")
                and set(labels) == {"heatmaps"} and not inps):
            preds, loss = self.model.forward_with_loss(imgs, labels["heatmaps"])
            return [preds, loss]                 # loss: (N, nstack=1)

        combined_hm_preds = self.model(imgs, **inps)
        if type(combined_hm_preds) != list and type(combined_hm_preds) != tuple:
            combined_hm_preds = [combined_hm_preds]
        loss = self.calc_loss(**labels, combined_hm_preds=combined_hm_preds)
        return list(combined_hm_preds) + list([loss])

    __call__ = forward


# ----------------------------------------------------------------------------
# main
# ----------------------------------------------------------------------------
if __name__ == "__main__":
    # Small shapes: batch=2, in-channels=3, spatial=16x16, hidden=32, joints=4.
    N, C, H, W = 2, 3, 16, 16
    HIDDEN, J = 32, 4

    key = jax.random.PRNGKey(0)
    k_img, k_hm, k_w1, k_w2 = jax.random.split(key, 4)

    imgs = jax.random.normal(k_img, (N, C, H, W), dtype=jnp.float32)
    heatmaps = jax.random.uniform(k_hm, (N, J, H, W), dtype=jnp.float32)

    # Deterministic parameters, stored pre-transposed (pixels-on-lanes).
    # Non-zero biases so the padded-tail masking path is actually exercised.
    w1t = 0.1 * jax.random.normal(k_w1, (HIDDEN, C), dtype=jnp.float32)
    b1 = jnp.full((HIDDEN, 1), 0.10, dtype=jnp.float32)
    w2t = 0.1 * jax.random.normal(k_w2, (J, HIDDEN), dtype=jnp.float32)
    b2 = jnp.full((J, 1), 0.05, dtype=jnp.float32)

    def _ref_forward(im):
        n_, c_, h_, w_ = im.shape
        xf = im.reshape(n_, c_, h_ * w_)
        hh = jnp.maximum(jnp.einsum('hc,ncp->nhp', w1t, xf) + b1[None], 0.0)
        pr = jnp.einsum('jh,nhp->njp', w2t, hh) + b2[None]
        return pr.reshape(n_, J, h_, w_)

    model = PoseNet((w1t, b1, w2t, b2))
    trainer = Trainer(model, inference_keys=[], calc_loss=calc_loss)

    # Training mode: fused kernel, returns [preds, loss] like the PyTorch module.
    trainer.train()
    out_train = jax.block_until_ready(trainer(imgs, heatmaps=heatmaps))
    preds, loss = out_train[0], out_train[1]
    assert preds.shape == (N, J, H, W)
    assert loss.shape == (N, 1)                  # (batch, nstack=1)

    # Numerics cross-checks: kernel vs pure-JAX reference, fused vs un-fused.
    preds_ref = _ref_forward(imgs)
    loss_ref = jnp.mean((preds_ref - heatmaps) ** 2, axis=(1, 2, 3))[:, None]
    assert jnp.allclose(preds, preds_ref, rtol=1e-5, atol=1e-5)
    assert jnp.allclose(loss, loss_ref, rtol=1e-5, atol=1e-6)
    loss_unfused = calc_loss(heatmaps=heatmaps, combined_hm_preds=[preds])
    assert jnp.allclose(loss, loss_unfused, rtol=1e-5, atol=1e-6)

    # Eval mode: returns just the model output (no gt DMA, no loss kernel).
    trainer.eval()
    out_eval = jax.block_until_ready(trainer(imgs, heatmaps=heatmaps))
    assert out_eval.shape == (N, J, H, W)
    assert jnp.allclose(out_eval, preds, rtol=1e-5, atol=1e-6)

    # Non-128-divisible spatial size exercises the pad + masked-tail loss path.
    imgs_odd = jax.random.normal(k_img, (N, C, 10, 10), dtype=jnp.float32)
    hm_odd = jax.random.uniform(k_hm, (N, J, 10, 10), dtype=jnp.float32)
    trainer.train()
    out_odd = jax.block_until_ready(trainer(imgs_odd, heatmaps=hm_odd))
    p_odd, l_odd = out_odd[0], out_odd[1]
    p_odd_ref = _ref_forward(imgs_odd)
    l_odd_ref = jnp.mean((p_odd_ref - hm_odd) ** 2, axis=(1, 2, 3))[:, None]
    assert jnp.allclose(p_odd, p_odd_ref, rtol=1e-5, atol=1e-5)
    assert jnp.allclose(l_odd, l_odd_ref, rtol=1e-5, atol=1e-6)

    print("KERNEL_OK")
</pallas_src>

<mosaic_0001>
module attributes {stable_mosaic.version = 11 : i64} {
  func.func @_pose_train_kernel(%arg0: i32, %arg1: i32, %arg2: memref<1x3x256xf32, #tpu.memory_space<vmem>>, %arg3: memref<32x3xf32, #tpu.memory_space<vmem>>, %arg4: memref<32x1xf32, #tpu.memory_space<vmem>>, %arg5: memref<4x32xf32, #tpu.memory_space<vmem>>, %arg6: memref<4x1xf32, #tpu.memory_space<vmem>>, %arg7: memref<1x4x256xf32, #tpu.memory_space<vmem>>, %arg8: memref<1x4x256xf32, #tpu.memory_space<vmem>>, %arg9: memref<1x1x128xf32, #tpu.memory_space<vmem>>, %arg10: memref<1x1xf32, #tpu.memory_space<vmem>>) attributes {dimension_semantics = [#tpu.dimension_semantics<parallel>, #tpu.dimension_semantics<arbitrary>], iteration_bounds = array<i64: 2, 1>, scalar_prefetch = 0 : i64, scratch_operands = 1 : i64, tpu.core_type = #tpu.core_type<tc>, window_params = [{transform_indices = @transform_0, window_bounds = array<i64: 1, 3, 256>}, {pipeline_mode = #tpu.pipeline_mode<synchronous>, transform_indices = @transform_1, window_bounds = array<i64: 32, 3>}, {pipeline_mode = #tpu.pipeline_mode<synchronous>, transform_indices = @transform_2, window_bounds = array<i64: 32, 1>}, {pipeline_mode = #tpu.pipeline_mode<synchronous>, transform_indices = @transform_3, window_bounds = array<i64: 4, 32>}, {pipeline_mode = #tpu.pipeline_mode<synchronous>, transform_indices = @transform_4, window_bounds = array<i64: 4, 1>}, {transform_indices = @transform_5, window_bounds = array<i64: 1, 4, 256>}, {transform_indices = @transform_6, window_bounds = array<i64: 1, 4, 256>}, {transform_indices = @transform_7, window_bounds = array<i64: 1, 1, 128>}]} {
    %c0_i32 = arith.constant 0 : i32
    %0 = arith.cmpi eq, %arg1, %c0_i32 : i32
    %1 = arith.extui %0 : i1 to i32
    %c0_i32_0 = arith.constant 0 : i32
    %2 = arith.cmpi ne, %1, %c0_i32_0 : i32
    scf.if %2 {
      %cst_28 = arith.constant 0.000000e+00 : f32
      %49 = vector.broadcast %cst_28 : f32 to vector<1x1xf32>
      %c0_29 = arith.constant 0 : index
      %c0_30 = arith.constant 0 : index
      %50 = vector.load %arg10[%c0_29, %c0_30] : memref<1x1xf32, #tpu.memory_space<vmem>>, vector<1x1xf32>
      tpu.vector_store %arg10[%c0_29, %c0_30], %49 {strides = array<i32>} : memref<1x1xf32, #tpu.memory_space<vmem>>, vector<1x1xf32>,
    } else {
    }
    %c0 = arith.constant 0 : index
    %c0_1 = arith.constant 0 : index
    %c0_2 = arith.constant 0 : index
    %3 = vector.load %arg2[%c0, %c0_1, %c0_2] : memref<1x3x256xf32, #tpu.memory_space<vmem>>, vector<1x3x256xf32>
    %4 = vector.shape_cast %3 : vector<1x3x256xf32> to vector<3x256xf32>
    %c0_3 = arith.constant 0 : index
    %c0_4 = arith.constant 0 : index
    %5 = vector.load %arg3[%c0_3, %c0_4] : memref<32x3xf32, #tpu.memory_space<vmem>>, vector<32x1xf32>
    %6 = vector.extract_strided_slice %4 {offsets = [0, 0], sizes = [1, 256], strides = [1, 1]} : vector<3x256xf32> to vector<1x256xf32>
    %7 = vector.broadcast %5 : vector<32x1xf32> to vector<32x256xf32>
    %8 = vector.broadcast %6 : vector<1x256xf32> to vector<32x256xf32>
    %9 = arith.mulf %7, %8 : vector<32x256xf32>
    %c0_5 = arith.constant 0 : index
    %c1 = arith.constant 1 : index
    %10 = vector.load %arg3[%c0_5, %c1] : memref<32x3xf32, #tpu.memory_space<vmem>>, vector<32x1xf32>
    %11 = vector.extract_strided_slice %4 {offsets = [1, 0], sizes = [1, 256], strides = [1, 1]} : vector<3x256xf32> to vector<1x256xf32>
    %12 = vector.broadcast %10 : vector<32x1xf32> to vector<32x256xf32>
    %13 = vector.broadcast %11 : vector<1x256xf32> to vector<32x256xf32>
    %14 = arith.mulf %12, %13 : vector<32x256xf32>
    %15 = arith.addf %9, %14 : vector<32x256xf32>
    %c0_6 = arith.constant 0 : index
    %c2 = arith.constant 2 : index
    %16 = vector.load %arg3[%c0_6, %c2] : memref<32x3xf32, #tpu.memory_space<vmem>>, vector<32x1xf32>
    %17 = vector.extract_strided_slice %4 {offsets = [2, 0], sizes = [1, 256], strides = [1, 1]} : vector<3x256xf32> to vector<1x256xf32>
    %18 = vector.broadcast %16 : vector<32x1xf32> to vector<32x256xf32>
    %19 = vector.broadcast %17 : vector<1x256xf32> to vector<32x256xf32>
    %20 = arith.mulf %18, %19 : vector<32x256xf32>
    %21 = arith.addf %15, %20 : vector<32x256xf32>
    %c0_7 = arith.constant 0 : index
    %c0_8 = arith.constant 0 : index
    %22 = vector.load %arg4[%c0_7, %c0_8] : memref<32x1xf32, #tpu.memory_space<vmem>>, vector<32x1xf32>
    %23 = vector.broadcast %22 : vector<32x1xf32> to vector<32x256xf32>
    %24 = arith.addf %21, %23 : vector<32x256xf32>
    %cst = arith.constant 0.000000e+00 : f32
    %25 = vector.broadcast %cst : f32 to vector<32x256xf32>
    %26 = arith.maximumf %24, %25 : vector<32x256xf32>
    %c0_9 = arith.constant 0 : index
    %c0_10 = arith.constant 0 : index
    %27 = vector.load %arg5[%c0_9, %c0_10] : memref<4x32xf32, #tpu.memory_space<vmem>>, vector<4x32xf32>
    %cst_11 = arith.constant dense<0.000000e+00> : vector<4x256xf32>
    %28 = tpu.matmul %27, %26, %cst_11 {dimension_numbers = #tpu.dot_dimension_numbers<[1], [0], [0], [1], [0, 0, 1, 1], [], []>} : vector<4x32xf32>, vector<32x256xf32>, vector<4x256xf32> -> vector<4x256xf32>
    %c0_12 = arith.constant 0 : index
    %c0_13 = arith.constant 0 : index
    %29 = vector.load %arg6[%c0_12, %c0_13] : memref<4x1xf32, #tpu.memory_space<vmem>>, vector<4x1xf32>
    %30 = vector.broadcast %29 : vector<4x1xf32> to vector<4x256xf32>
    %31 = arith.addf %28, %30 : vector<4x256xf32>
    %c0_14 = arith.constant 0 : index
    %c0_15 = arith.constant 0 : index
    %c0_16 = arith.constant 0 : index
    %32 = vector.load %arg8[%c0_14, %c0_15, %c0_16] : memref<1x4x256xf32, #tpu.memory_space<vmem>>, vector<1x4x256xf32>
    %33 = vector.shape_cast %32 : vector<1x4x256xf32> to vector<4x256xf32>
    %34 = vector.shape_cast %31 : vector<4x256xf32> to vector<1x4x256xf32>
    tpu.vector_store %arg8[%c0_14, %c0_15, %c0_16], %34 {strides = array<i32>} : memref<1x4x256xf32, #tpu.memory_space<vmem>>, vector<1x4x256xf32>,
    %c0_17 = arith.constant 0 : index
    %c0_18 = arith.constant 0 : index
    %c0_19 = arith.constant 0 : index
    %35 = vector.load %arg7[%c0_17, %c0_18, %c0_19] : memref<1x4x256xf32, #tpu.memory_space<vmem>>, vector<1x4x256xf32>
    %36 = vector.shape_cast %35 : vector<1x4x256xf32> to vector<4x256xf32>
    %37 = arith.subf %31, %36 : vector<4x256xf32>
    %38 = arith.mulf %37, %37 : vector<4x256xf32>
    %cst_20 = arith.constant dense<0.000000e+00> : vector<4xf32>
    %39 = vector.multi_reduction <add>, %38, %cst_20 [1] : vector<4x256xf32> to vector<4xf32>
    %40 = vector.shape_cast %39 : vector<4xf32> to vector<4x1xf32>
    %c0_21 = arith.constant 0 : index
    %c0_22 = arith.constant 0 : index
    %41 = vector.load %arg10[%c0_21, %c0_22] : memref<1x1xf32, #tpu.memory_space<vmem>>, vector<1x1xf32>
    %cst_23 = arith.constant dense<0.000000e+00> : vector<1xf32>
    %42 = vector.multi_reduction <add>, %40, %cst_23 [0] : vector<4x1xf32> to vector<1xf32>
    %43 = vector.shape_cast %42 : vector<1xf32> to vector<1x1xf32>
    %44 = arith.addf %41, %43 : vector<1x1xf32>
    %c0_24 = arith.constant 0 : index
    %c0_25 = arith.constant 0 : index
    %45 = vector.load %arg10[%c0_24, %c0_25] : memref<1x1xf32, #tpu.memory_space<vmem>>, vector<1x1xf32>
    tpu.vector_store %arg10[%c0_24, %c0_25], %44 {strides = array<i32>} : memref<1x1xf32, #tpu.memory_space<vmem>>, vector<1x1xf32>,
    %c0_i32_26 = arith.constant 0 : i32
    %46 = arith.cmpi eq, %arg1, %c0_i32_26 : i32
    %47 = arith.extui %46 : i1 to i32
    %c0_i32_27 = arith.constant 0 : i32
    %48 = arith.cmpi ne, %47, %c0_i32_27 : i32
    scf.if %48 {
      %c0_28 = arith.constant 0 : index
      %c0_29 = arith.constant 0 : index
      %49 = vector.load %arg10[%c0_28, %c0_29] : memref<1x1xf32, #tpu.memory_space<vmem>>, vector<1x1xf32>
      %cst_30 = arith.constant 9.765625E-4 : f32
      %50 = vector.broadcast %cst_30 : f32 to vector<1x1xf32>
      %51 = arith.mulf %49, %50 : vector<1x1xf32>
      %52 = vector.shape_cast %51 : vector<1x1xf32> to vector<1x1x1xf32>
      %53 = vector.shape_cast %52 : vector<1x1x1xf32> to vector<1x1x1xf32>
      %54 = vector.broadcast %53 : vector<1x1x1xf32> to vector<1x1x128xf32>
      %c0_31 = arith.constant 0 : index
      %c0_32 = arith.constant 0 : index
      %c0_33 = arith.constant 0 : index
      %55 = vector.load %arg9[%c0_31, %c0_32, %c0_33] : memref<1x1x128xf32, #tpu.memory_space<vmem>>, vector<1x1x128xf32>
      tpu.vector_store %arg9[%c0_31, %c0_32, %c0_33], %54 {strides = array<i32>} : memref<1x1x128xf32, #tpu.memory_space<vmem>>, vector<1x1x128xf32>,
    } else {
    }
    return
  }
  func.func @transform_0(%arg0: i32, %arg1: i32) -> (i32, i32, i32) {
    %c0_i32 = arith.constant 0 : i32
    %c0_i32_0 = arith.constant 0 : i32
    return %arg0, %c0_i32, %arg1 : i32, i32, i32
  }
  func.func @transform_1(%arg0: i32, %arg1: i32) -> (i32, i32) {
    %c0_i32 = arith.constant 0 : i32
    %c0_i32_0 = arith.constant 0 : i32
    %c0_i32_1 = arith.constant 0 : i32
    return %c0_i32, %c0_i32_0 : i32, i32
  }
  func.func @transform_2(%arg0: i32, %arg1: i32) -> (i32, i32) {
    %c0_i32 = arith.constant 0 : i32
    %c0_i32_0 = arith.constant 0 : i32
    %c0_i32_1 = arith.constant 0 : i32
    return %c0_i32, %c0_i32_0 : i32, i32
  }
  func.func @transform_3(%arg0: i32, %arg1: i32) -> (i32, i32) {
    %c0_i32 = arith.constant 0 : i32
    %c0_i32_0 = arith.constant 0 : i32
    %c0_i32_1 = arith.constant 0 : i32
    return %c0_i32, %c0_i32_0 : i32, i32
  }
  func.func @transform_4(%arg0: i32, %arg1: i32) -> (i32, i32) {
    %c0_i32 = arith.constant 0 : i32
    %c0_i32_0 = arith.constant 0 : i32
    %c0_i32_1 = arith.constant 0 : i32
    return %c0_i32, %c0_i32_0 : i32, i32
  }
  func.func @transform_5(%arg0: i32, %arg1: i32) -> (i32, i32, i32) {
    %c0_i32 = arith.constant 0 : i32
    %c0_i32_0 = arith.constant 0 : i32
    return %arg0, %c0_i32, %arg1 : i32, i32, i32
  }
  func.func @transform_6(%arg0: i32, %arg1: i32) -> (i32, i32, i32) {
    %c0_i32 = arith.constant 0 : i32
    %c0_i32_0 = arith.constant 0 : i32
    return %arg0, %c0_i32, %arg1 : i32, i32, i32
  }
  func.func @transform_7(%arg0: i32, %arg1: i32) -> (i32, i32, i32) {
    %c0_i32 = arith.constant 0 : i32
    %c0_i32_0 = arith.constant 0 : i32
    %c0_i32_1 = arith.constant 0 : i32
    return %arg0, %c0_i32, %c0_i32_0 : i32, i32, i32
  }
}

</mosaic_0001>

<llo_original>
// kernel: tpu_custom_call.1
$region0: #{tpu_custom_call.1}
  #allocation0 [shape = 'u32[]', space=smem, size = 0x4, offset = 0x4, fixed_abs, tag = 'smem constant byte address 0x4 - core index']
  #allocation1 [shape = 'u32[144,128]{1,0:T(1,128)}', space=vmem, size = 0x12000, scoped, tag = 'internal scratch']
  #allocation2 [shape = 'f32[1,1]{1,0:T(1,128)}', space=vmem, size = 0x200, scoped, tag = 'scratch operand']
  %s0 = inlined_call_operand.vmem [shape: f32[2,3,256], index: 0, kind: input, shape index: {}]
  %s1 = inlined_call_operand.vmem [shape: f32[32,3], index: 1, kind: input, shape index: {}]
  %s2 = inlined_call_operand.vmem [shape: f32[32,1], index: 2, kind: input, shape index: {}]
  %s3 = inlined_call_operand.vmem [shape: f32[4,32], index: 3, kind: input, shape index: {}]
  %s4 = inlined_call_operand.vmem [shape: f32[4,1], index: 4, kind: input, shape index: {}]
  %s5 = inlined_call_operand.vmem [shape: f32[2,4,256], index: 5, kind: input, shape index: {}]
  %s6 = inlined_call_operand.hbm [shape: f32[2,4,256], index: 6, kind: output, shape index: {0}]
  %s7 = inlined_call_operand.hbm [shape: f32[2,1,128], index: 7, kind: output, shape index: {1}]
  %8 = xla_tuple %s6, %s7
  %s9 = sld [smem:[#allocation0]]
  $region73: #{tpu_custom_call.1} parent=0
    _
  %s11 = ssub.s32 1, %s9
  %s12 = scalar_select 0, %s11, %s9
  $region1: #{tpu_custom_call.1} parent=0
    #allocation3 [shape = 'u8[8192]{0}', space=vmem, size = 0x2000, scoped, tag = 'output window, operand 0']
    #allocation4 [shape = 's32[2]{0}', space=sflag, size = 0x8, scoped, tag = 'scoped memory for tpu_custom_call.1']
    #allocation5 [shape = 'u8[1024]{0}', space=vmem, size = 0x400, scoped, tag = 'output window, operand 1']
    #allocation6 [shape = 's32[2]{0}', space=sflag, size = 0x8, scoped, tag = 'scoped memory for tpu_custom_call.1']
    %13 = vsyncpa [#allocation4], 0
    %s14 = scalar_lea.sflag [#allocation4], 1
    %15 = vsyncpa %s14, 0
    %16 = vsyncpa [#allocation6], 0
    %s17 = scalar_lea.sflag [#allocation6], 1
    %18 = vsyncpa %s17, 0
    loop: start=0, step=1, limit=4
    $region2: #{tpu_custom_call.1} parent=1 // loop_pre_header
      _
    $region3: #{tpu_custom_call.1} parent=1 // loop_header
      %s20 = sphi 0, %s24
      %p21 = scmp.ge.s32.totalorder %s20, 4
      %s27 = sphi 0, %s39
      %s28 = sphi 0, %s35
      %s29 = sphi 0, %s27
      %s30 = sphi 0, %s28
      %s31 = sphi 0, %s29
      %s32 = sphi 0, %s30
      %s44 = sphi 0, %s46
      %s47 = sphi 0, %s44
      %s48 = sphi 0, %s47
      %s64 = sphi 0, %s48
      %s68 = sphi 0, %s68
      %s70 = sphi 0, %s68
      %s71 = sphi 0, %s70
      %s85 = sphi 0, %s71
      %s89 = sphi 0, %s89
      %s91 = sphi 0, %s89
      %s92 = sphi 0, %s91
      %s106 = sphi 0, %s92
      %s110 = sphi 0, %s110
      %s112 = sphi 0, %s110
      %s113 = sphi 0, %s112
      %s127 = sphi 0, %s113
      %s131 = sphi 0, %s131
      %s133 = sphi 0, %s131
      %s134 = sphi 0, %s133
      %s148 = sphi 0, %s134
      %s156 = sphi 0, %s158
      %s159 = sphi 0, %s156
      %s160 = sphi 0, %s159
      %s176 = sphi 0, %s160
      %s184 = sphi 0, %s186
      %s187 = sphi 0, %s184
      %s188 = sphi 0, %s187
      %s204 = sphi 0, %s188
      %s210 = sphi 0, %s212
      %s213 = sphi 0, %s210
      %s214 = sphi 0, %s213
      %s230 = sphi 0, %s214
    $region4: #{tpu_custom_call.1} parent=1 // loop_header_branch
      %23 = sbr.rel (%p21) target = $region8
    $region5: #{tpu_custom_call.1} parent=1 // loop_body
      %s25 = ssub.s32 %s20, 1
      %s26 = ssub.s32 %s20, 2
      %s33 = sadd.s32 1, %s28
      %p34 = scmp.ge.s32.totalorder %s33, 1
      %s35 = scalar_select %p34, 0, %s33
      %s36 = sadd.s32 1, %s27
      %s37 = scalar_select %p34, %s36, %s27
      %p38 = scmp.ge.s32.totalorder %s37, 2
      %s39 = scalar_select %p38, 0, %s37
      %s40 = ssub.s32 %s27, %s39
      %s41 = ssub.s32 %s28, %s35
      %s42 = sor.u32 %s40, %s41
      %p43 = scmp.eq.s32.totalorder %s42, 0
      %s45 = sadd.s32 %s44, 1
      %s46 = scalar_select %p43, %s44, %s45
      %p49 = pneg %p43
      %p50 = scmp.eq.s32.totalorder %s20, 1
      %p51 = por %p49, %p50
      %p52 = scmp.ne.s32.totalorder %s44, %s47
      %p53 = scmp.eq.s32.totalorder %s20, 0
      %p54 = por %p52, %p53
      %p55 = scmp.ne.s32.totalorder %s44, %s47
      %p56 = scmp.eq.s32.totalorder %s25, 1
      %p57 = por %p55, %p56
      %p58 = scmp.ne.s32.totalorder %s47, %s48
      %p59 = scmp.eq.s32.totalorder %s25, 0
      %p60 = por %p58, %p59
      %p61 = scmp.ne.s32.totalorder %s47, %s48
      %p62 = scmp.eq.s32.totalorder %s26, 1
      %p63 = por %p61, %p62
      %p65 = scmp.ne.s32.totalorder %s48, %s64
      %p66 = scmp.eq.s32.totalorder %s26, 0
      %p67 = por %p65, %p66
      %s69 = sadd.s32 %s68, 1
      %p72 = scmp.eq.s32.totalorder %s20, 1
      %p73 = scmp.ne.s32.totalorder %s68, %s70
      %p74 = scmp.eq.s32.totalorder %s20, 0
      %p75 = por %p73, %p74
      %p76 = scmp.ne.s32.totalorder %s68, %s70
      %p77 = scmp.eq.s32.totalorder %s25, 1
      %p78 = por %p76, %p77
      %p79 = scmp.ne.s32.totalorder %s70, %s71
      %p80 = scmp.eq.s32.totalorder %s25, 0
      %p81 = por %p79, %p80
      %p82 = scmp.ne.s32.totalorder %s70, %s71
      %p83 = scmp.eq.s32.totalorder %s26, 1
      %p84 = por %p82, %p83
      %p86 = scmp.ne.s32.totalorder %s71, %s85
      %p87 = scmp.eq.s32.totalorder %s26, 0
      %p88 = por %p86, %p87
      %s90 = sadd.s32 %s89, 1
      %p93 = scmp.eq.s32.totalorder %s20, 1
      %p94 = scmp.ne.s32.totalorder %s89, %s91
      %p95 = scmp.eq.s32.totalorder %s20, 0
      %p96 = por %p94, %p95
      %p97 = scmp.ne.s32.totalorder %s89, %s91
      %p98 = scmp.eq.s32.totalorder %s25, 1
      %p99 = por %p97, %p98
      %p100 = scmp.ne.s32.totalorder %s91, %s92
      %p101 = scmp.eq.s32.totalorder %s25, 0
      %p102 = por %p100, %p101
      %p103 = scmp.ne.s32.totalorder %s91, %s92
      %p104 = scmp.eq.s32.totalorder %s26, 1
      %p105 = por %p103, %p104
      %p107 = scmp.ne.s32.totalorder %s92, %s106
      %p108 = scmp.eq.s32.totalorder %s26, 0
      %p109 = por %p107, %p108
      %s111 = sadd.s32 %s110, 1
      %p114 = scmp.eq.s32.totalorder %s20, 1
      %p115 = scmp.ne.s32.totalorder %s110, %s112
      %p116 = scmp.eq.s32.totalorder %s20, 0
      %p117 = por %p115, %p116
      %p118 = scmp.ne.s32.totalorder %s110, %s112
      %p119 = scmp.eq.s32.totalorder %s25, 1
      %p120 = por %p118, %p119
      %p121 = scmp.ne.s32.totalorder %s112, %s113
      %p122 = scmp.eq.s32.totalorder %s25, 0
      %p123 = por %p121, %p122
      %p124 = scmp.ne.s32.totalorder %s112, %s113
      %p125 = scmp.eq.s32.totalorder %s26, 1
      %p126 = por %p124, %p125
      %p128 = scmp.ne.s32.totalorder %s113, %s127
      %p129 = scmp.eq.s32.totalorder %s26, 0
      %p130 = por %p128, %p129
      %s132 = sadd.s32 %s131, 1
      %p135 = scmp.eq.s32.totalorder %s20, 1
      %p136 = scmp.ne.s32.totalorder %s131, %s133
      %p137 = scmp.eq.s32.totalorder %s20, 0
      %p138 = por %p136, %p137
      %p139 = scmp.ne.s32.totalorder %s131, %s133
      %p140 = scmp.eq.s32.totalorder %s25, 1
      %p141 = por %p139, %p140
      %p142 = scmp.ne.s32.totalorder %s133, %s134
      %p143 = scmp.eq.s32.totalorder %s25, 0
      %p144 = por %p142, %p143
      %p145 = scmp.ne.s32.totalorder %s133, %s134
      %p146 = scmp.eq.s32.totalorder %s26, 1
      %p147 = por %p145, %p146
      %p149 = scmp.ne.s32.totalorder %s134, %s148
      %p150 = scmp.eq.s32.totalorder %s26, 0
      %p151 = por %p149, %p150
      %s152 = ssub.s32 %s27, %s39
      %s153 = ssub.s32 %s28, %s35
      %s154 = sor.u32 %s152, %s153
      %p155 = scmp.eq.s32.totalorder %s154, 0
      %s157 = sadd.s32 %s156, 1
      %s158 = scalar_select %p155, %s156, %s157
      %p161 = pneg %p155
      %p162 = scmp.eq.s32.totalorder %s20, 1
      %p163 = por %p161, %p162
      %p164 = scmp.ne.s32.totalorder %s156, %s159
      %p165 = scmp.eq.s32.totalorder %s20, 0
      %p166 = por %p164, %p165
      %p167 = scmp.ne.s32.totalorder %s156, %s159
      %p168 = scmp.eq.s32.totalorder %s25, 1
      %p169 = por %p167, %p168
      %p170 = scmp.ne.s32.totalorder %s159, %s160
      %p171 = scmp.eq.s32.totalorder %s25, 0
      %p172 = por %p170, %p171
      %p173 = scmp.ne.s32.totalorder %s159, %s160
      %p174 = scmp.eq.s32.totalorder %s26, 1
      %p175 = por %p173, %p174
      %p177 = scmp.ne.s32.totalorder %s160, %s176
      %p178 = scmp.eq.s32.totalorder %s26, 0
      %p179 = por %p177, %p178
      %s180 = ssub.s32 %s27, %s39
      %s181 = ssub.s32 %s28, %s35
      %s182 = sor.u32 %s180, %s181
      %p183 = scmp.eq.s32.totalorder %s182, 0
      %s185 = sadd.s32 %s184, 1
      %s186 = scalar_select %p183, %s184, %s185
      %p189 = pneg %p183
      %p190 = scmp.eq.s32.totalorder %s20, 1
      %p191 = por %p189, %p190
      %p192 = scmp.ne.s32.totalorder %s184, %s187
      %p193 = scmp.eq.s32.totalorder %s20, 0
      %p194 = por %p192, %p193
      %p195 = scmp.ne.s32.totalorder %s184, %s187
      %p196 = scmp.eq.s32.totalorder %s25, 1
      %p197 = por %p195, %p196
      %p198 = scmp.ne.s32.totalorder %s187, %s188
      %p199 = scmp.eq.s32.totalorder %s25, 0
      %p200 = por %p198, %p199
      %p201 = scmp.ne.s32.totalorder %s187, %s188
      %p202 = scmp.eq.s32.totalorder %s26, 1
      %p203 = por %p201, %p202
      %p205 = scmp.ne.s32.totalorder %s188, %s204
      %p206 = scmp.eq.s32.totalorder %s26, 0
      %p207 = por %p205, %p206
      %s208 = ssub.s32 %s27, %s39
      %p209 = scmp.eq.s32.totalorder %s208, 0
      %s211 = sadd.s32 %s210, 1
      %s212 = scalar_select %p209, %s210, %s211
      %p215 = pneg %p209
      %p216 = scmp.eq.s32.totalorder %s20, 1
      %p217 = por %p215, %p216
      %p218 = scmp.ne.s32.totalorder %s210, %s213
      %p219 = scmp.eq.s32.totalorder %s20, 0
      %p220 = por %p218, %p219
      %p221 = scmp.ne.s32.totalorder %s210, %s213
      %p222 = scmp.eq.s32.totalorder %s25, 1
      %p223 = por %p221, %p222
      %p224 = scmp.ne.s32.totalorder %s213, %s214
      %p225 = scmp.eq.s32.totalorder %s25, 0
      %p226 = por %p224, %p225
      %p227 = scmp.ne.s32.totalorder %s213, %s214
      %p228 = scmp.eq.s32.totalorder %s26, 1
      %p229 = por %p227, %p228
      %p231 = scmp.ne.s32.totalorder %s214, %s230
      %p232 = scmp.eq.s32.totalorder %s26, 0
      %p233 = por %p231, %p232
      %p234 = scmp.le.s32.totalorder 1, %s20
      %p235 = scmp.lt.s32.totalorder %s20, 3
      %p236 = pnand %p234, %p235
      %p237 = pneg %p236
      // Predicated region
      $region9: #{tpu_custom_call.1} parent=5 // pred_check
        _
      $region10: #{tpu_custom_call.1} parent=5 // pred_check_branch
        %239 = sbr.rel (%p236) target = $region12
      $region11: #{tpu_custom_call.1} parent=5 // pred_region
        %s240 = ssub.s32 %s20, 1
        // Predicated region
        $region13: #{tpu_custom_call.1} parent=11 // pred_check
          %p241 = pneg %p81
        $region14: #{tpu_custom_call.1} parent=11 // pred_check_branch
          %243 = sbr.rel (%p241) target = $region16
        $region15: #{tpu_custom_call.1} parent=11 // pred_region
          _
        $region16: #{tpu_custom_call.1} parent=11 // pred_fallthru
          _
        // Predicated region
        $region17: #{tpu_custom_call.1} parent=11 // pred_check
          %p244 = pneg %p102
        $region18: #{tpu_custom_call.1} parent=11 // pred_check_branch
          %246 = sbr.rel (%p244) target = $region20
        $region19: #{tpu_custom_call.1} parent=11 // pred_region
          _
        $region20: #{tpu_custom_call.1} parent=11 // pred_fallthru
          _
        // Predicated region
        $region21: #{tpu_custom_call.1} parent=11 // pred_check
          %p247 = pneg %p123
        $region22: #{tpu_custom_call.1} parent=11 // pred_check_branch
          %249 = sbr.rel (%p247) target = $region24
        $region23: #{tpu_custom_call.1} parent=11 // pred_region
          _
        $region24: #{tpu_custom_call.1} parent=11 // pred_fallthru
          _
        // Predicated region
        $region25: #{tpu_custom_call.1} parent=11 // pred_check
          %p250 = pneg %p144
        $region26: #{tpu_custom_call.1} parent=11 // pred_check_branch
          %252 = sbr.rel (%p250) target = $region28
        $region27: #{tpu_custom_call.1} parent=11 // pred_region
          _
        $region28: #{tpu_custom_call.1} parent=11 // pred_fallthru
          _
      $region12: #{tpu_custom_call.1} parent=5 // pred_fallthru
        _
      %p253 = scmp.lt.s32.totalorder %s20, 2
      // Predicated region
      $region29: #{tpu_custom_call.1} parent=5 // pred_check
        %p254 = pneg %p253
      $region30: #{tpu_custom_call.1} parent=5 // pred_check_branch
        %256 = sbr.rel (%p254) target = $region32
      $region31: #{tpu_custom_call.1} parent=5 // pred_region
        // Predicated region
        $region33: #{tpu_custom_call.1} parent=31 // pred_check
          %p257 = pneg %p54
        $region34: #{tpu_custom_call.1} parent=31 // pred_check_branch
          %259 = sbr.rel (%p257) target = $region36
        $region35: #{tpu_custom_call.1} parent=31 // pred_region
          %s260 = smul.u32 2, %s28
          %p261 = scmp.lt.s32.totalorder %s27, 1
          %s262 = scalar_select %p261, %s27, 1
          %p263 = scmp.lt.s32.totalorder %s260, 1
          %s264 = scalar_select %p263, %s260, 1
          %s265 = smul.addr %s262, 2
          %s266 = sadd.s32 %s264, %s265
          %s267 = smul.addr %s266, 4
          %s268 = scalar_lea.vmem %s0, %s267
          %s269 = smul.u32 2, %s28
        $region36: #{tpu_custom_call.1} parent=31 // pred_fallthru
          _
        // Predicated region
        $region37: #{tpu_custom_call.1} parent=31 // pred_check
          %p270 = pneg %p166
        $region38: #{tpu_custom_call.1} parent=31 // pred_check_branch
          %272 = sbr.rel (%p270) target = $region40
        $region39: #{tpu_custom_call.1} parent=31 // pred_region
          %s273 = smul.u32 2, %s28
          %p274 = scmp.lt.s32.totalorder %s27, 1
          %s275 = scalar_select %p274, %s27, 1
          %p276 = scmp.lt.s32.totalorder %s273, 1
          %s277 = scalar_select %p276, %s273, 1
          %s278 = smul.addr %s275, 2
          %s279 = sadd.s32 %s277, %s278
          %s280 = smul.addr %s279, 4
          %s281 = scalar_lea.vmem %s5, %s280
          %s282 = smul.u32 2, %s28
        $region40: #{tpu_custom_call.1} parent=31 // pred_fallthru
          _
      $region32: #{tpu_custom_call.1} parent=5 // pred_fallthru
        _
      %p283 = scmp.le.s32.totalorder 1, %s20
      %p284 = scmp.lt.s32.totalorder %s20, 3
      %p285 = pnand %p283, %p284
      %p286 = pneg %p285
      // Predicated region
      $region41: #{tpu_custom_call.1} parent=5 // pred_check
        _
      $region42: #{tpu_custom_call.1} parent=5 // pred_check_branch
        %288 = sbr.rel (%p285) target = $region44
      $region43: #{tpu_custom_call.1} parent=5 // pred_region
        %s289 = ssub.s32 %s20, 1
        %s290 = smul.u32 2, %s30
        %p291 = scmp.lt.s32.totalorder %s29, 1
        %s292 = scalar_select %p291, %s29, 1
        %p293 = scmp.lt.s32.totalorder %s290, 1
        %s294 = scalar_select %p293, %s290, 1
        %s295 = smul.addr %s292, 2
        %s296 = sadd.s32 %s294, %s295
        %s297 = smul.addr %s296, 4
        %s298 = scalar_lea.vmem %s0, %s297
        %p299 = pneg %p60
        %p300 = pneg %p57
        %p301 = pneg %p81
        %p302 = pneg %p78
        %p303 = pneg %p102
        %p304 = pneg %p99
        %p305 = pneg %p123
        %p306 = pneg %p120
        %p307 = pneg %p144
        %p308 = pneg %p141
        %s309 = smul.u32 2, %s30
        %p310 = scmp.lt.s32.totalorder %s29, 1
        %s311 = scalar_select %p310, %s29, 1
        %p312 = scmp.lt.s32.totalorder %s309, 1
        %s313 = scalar_select %p312, %s309, 1
        %s314 = smul.addr %s311, 2
        %s315 = sadd.s32 %s313, %s314
        %s316 = smul.addr %s315, 4
        %s317 = scalar_lea.vmem %s5, %s316
        %p318 = pneg %p172
        %p319 = pneg %p169
        %p320 = pneg %p200
        %p321 = pneg %p197
        %s322 = sand.u32 %s187, 1
        %s323 = scalar_lea.sflag [#allocation4], %s322
        %s324 = sand.u32 %s187, 1
        %s325 = smul.addr %s324, 8
        %s326 = scalar_lea.vmem [#allocation3], %s325
        %p327 = pneg %p226
        %p328 = pneg %p223
        %s329 = sand.u32 %s213, 1
        %s330 = scalar_lea.sflag [#allocation6], %s329
        %s331 = sand.u32 %s213, 1
        %s332 = scalar_lea.vmem [#allocation5], %s331
        %s333 = smul.u32 2, %s30
        %p334 = scmp.lt.s32.totalorder %s29, 1
        %s335 = scalar_select %p334, %s29, 1
        %p336 = scmp.lt.s32.totalorder %s333, 1
        %s337 = scalar_select %p336, %s333, 1
        %s338 = smul.addr %s335, 2
        %s339 = sadd.s32 %s337, %s338
        %s340 = smul.addr %s339, 4
        %s341 = scalar_lea.vmem %s0, %s340
        %s342 = smul.u32 2, %s30
        %s343 = smul.u32 2, %s30
        %p344 = scmp.lt.s32.totalorder %s29, 1
        %s345 = scalar_select %p344, %s29, 1
        %p346 = scmp.lt.s32.totalorder %s343, 1
        %s347 = scalar_select %p346, %s343, 1
        %s348 = smul.addr %s345, 2
        %s349 = sadd.s32 %s347, %s348
        %s350 = smul.addr %s349, 4
        %s351 = scalar_lea.vmem %s5, %s350
        %s352 = smul.u32 2, %s30
        %s353 = smul.u32 2, %s30
        %p354 = scmp.eq.s32.totalorder %s30, 0
        // Predicated region
        $region45: #{tpu_custom_call.1} parent=43 // pred_check
          %p355 = pneg %p354
        $region46: #{tpu_custom_call.1} parent=43 // pred_check_branch
          %357 = sbr.rel (%p355) target = $region48
        $region47: #{tpu_custom_call.1} parent=43 // pred_region
          %vm358 = vcmask 0
          %359 = vst.msk [vmem:[#allocation2] sm:$0x1] %vm358, 0.0
        $region48: #{tpu_custom_call.1} parent=43 // pred_fallthru
          _
        %v360 = vld [vmem:[%s341] sm:$0x77]
        %v361 = vld [vmem:[%s1] sm:$0xff]
        %v362 = vld [vmem:[%s1 + $0x8] sm:$0xff]
        %v363 = vld [vmem:[%s1 + $0x10] sm:$0xff]
        %v364 = vld [vmem:[%s1 + $0x18] sm:$0xff]
        %366 = vset.pattern.permute.xlu0 0
        %367 = vperm.xlu0 %366, %v361
        %v368 = vpop.permute.xlu0 %367
        %371 = vset.pattern.permute.xlu0 0
        %372 = vperm.xlu0 %371, %v362
        %v373 = vpop.permute.xlu0 %372
        %376 = vset.pattern.permute.xlu0 0
        %377 = vperm.xlu0 %376, %v363
        %v378 = vpop.permute.xlu0 %377
        %381 = vset.pattern.permute.xlu0 0
        %382 = vperm.xlu0 %381, %v364
        %v383 = vpop.permute.xlu0 %382
        %v386 = vlaneseq
        %v387 = vshrl.u32 %v386, 7
        %v388 = vsub.s32 0, %v387
        %v389 = vrot.slane %v360, %v388
        %v390 = vlaneseq
        %v391 = vshrl.u32 %v390, 7
        %v392 = vsub.s32 4, %v391
        %v393 = vrot.slane %v360, %v392
        %v396 = vlaneseq
        %v397 = vshrl.u32 %v396, 7
        %v398 = vsub.s32 0, %v397
        %v399 = vrot.slane %v389, %v398
        %v400 = vlaneseq
        %v401 = vshrl.u32 %v400, 7
        %v402 = vsub.s32 0, %v401
        %v403 = vrot.slane %v393, %v402
        %v404 = vmul.f32 %v368, %v399
        %v405 = vmul.f32 %v368, %v403
        %v406 = vmul.f32 %v373, %v399
        %v407 = vmul.f32 %v373, %v403
        %v408 = vmul.f32 %v378, %v399
        %v409 = vmul.f32 %v378, %v403
        %v410 = vmul.f32 %v383, %v399
        %v411 = vmul.f32 %v383, %v403
        %412 = vset.pattern.permute.xlu0 1
        %413 = vperm.xlu0 %412, %v361
        %v414 = vpop.permute.xlu0 %413
        %416 = vset.pattern.permute.xlu0 1
        %417 = vperm.xlu0 %416, %v362
        %v418 = vpop.permute.xlu0 %417
        %420 = vset.pattern.permute.xlu0 1
        %421 = vperm.xlu0 %420, %v363
        %v422 = vpop.permute.xlu0 %421
        %424 = vset.pattern.permute.xlu0 1
        %425 = vperm.xlu0 %424, %v364
        %v426 = vpop.permute.xlu0 %425
        %v428 = vlaneseq
        %v429 = vshrl.u32 %v428, 7
        %v430 = vsub.s32 1, %v429
        %v431 = vrot.slane %v360, %v430
        %v432 = vlaneseq
        %v433 = vshrl.u32 %v432, 7
        %v434 = vsub.s32 5, %v433
        %v435 = vrot.slane %v360, %v434
        %v438 = vlaneseq
        %v439 = vshrl.u32 %v438, 7
        %v440 = vsub.s32 1, %v439
        %v441 = vrot.slane %v431, %v440
        %v442 = vlaneseq
        %v443 = vshrl.u32 %v442, 7
        %v444 = vsub.s32 1, %v443
        %v445 = vrot.slane %v435, %v444
        %v446 = vmul.f32 %v414, %v441
        %v447 = vmul.f32 %v414, %v445
        %v448 = vmul.f32 %v418, %v441
        %v449 = vmul.f32 %v418, %v445
        %v450 = vmul.f32 %v422, %v441
        %v451 = vmul.f32 %v422, %v445
        %v452 = vmul.f32 %v426, %v441
        %v453 = vmul.f32 %v426, %v445
        %v454 = vadd.f32 %v404, %v446
        %v455 = vadd.f32 %v405, %v447
        %v456 = vadd.f32 %v406, %v448
        %v457 = vadd.f32 %v407, %v449
        %v458 = vadd.f32 %v408, %v450
        %v459 = vadd.f32 %v409, %v451
        %v460 = vadd.f32 %v410, %v452
        %v461 = vadd.f32 %v411, %v453
        %462 = vset.pattern.permute.xlu0 2
        %463 = vperm.xlu0 %462, %v361
        %v464 = vpop.permute.xlu0 %463
        %466 = vset.pattern.permute.xlu0 2
        %467 = vperm.xlu0 %466, %v362
        %v468 = vpop.permute.xlu0 %467
        %470 = vset.pattern.permute.xlu0 2
        %471 = vperm.xlu0 %470, %v363
        %v472 = vpop.permute.xlu0 %471
        %474 = vset.pattern.permute.xlu0 2
        %475 = vperm.xlu0 %474, %v364
        %v476 = vpop.permute.xlu0 %475
        %v478 = vlaneseq
        %v479 = vshrl.u32 %v478, 7
        %v480 = vsub.s32 2, %v479
        %v481 = vrot.slane %v360, %v480
        %v482 = vlaneseq
        %v483 = vshrl.u32 %v482, 7
        %v484 = vsub.s32 6, %v483
        %v485 = vrot.slane %v360, %v484
        %v488 = vlaneseq
        %v489 = vshrl.u32 %v488, 7
        %v490 = vsub.s32 2, %v489
        %v491 = vrot.slane %v481, %v490
        %v492 = vlaneseq
        %v493 = vshrl.u32 %v492, 7
        %v494 = vsub.s32 2, %v493
        %v495 = vrot.slane %v485, %v494
        %v496 = vmul.f32 %v464, %v491
        %v497 = vmul.f32 %v464, %v495
        %v498 = vmul.f32 %v468, %v491
        %v499 = vmul.f32 %v468, %v495
        %v500 = vmul.f32 %v472, %v491
        %v501 = vmul.f32 %v472, %v495
        %v502 = vmul.f32 %v476, %v491
        %v503 = vmul.f32 %v476, %v495
        %v504 = vadd.f32 %v454, %v496
        %v505 = vadd.f32 %v455, %v497
        %v506 = vadd.f32 %v456, %v498
        %v507 = vadd.f32 %v457, %v499
        %v508 = vadd.f32 %v458, %v500
        %v509 = vadd.f32 %v459, %v501
        %v510 = vadd.f32 %v460, %v502
        %v511 = vadd.f32 %v461, %v503
        %v512 = vld [vmem:[%s2] sm:$0xff]
        %v513 = vld [vmem:[%s2 + $0x8] sm:$0xff]
        %v514 = vld [vmem:[%s2 + $0x10] sm:$0xff]
        %v515 = vld [vmem:[%s2 + $0x18] sm:$0xff]
        %517 = vset.pattern.permute.xlu0 0
        %518 = vperm.xlu0 %517, %v512
        %v519 = vpop.permute.xlu0 %518
        %522 = vset.pattern.permute.xlu0 0
        %523 = vperm.xlu0 %522, %v513
        %v524 = vpop.permute.xlu0 %523
        %527 = vset.pattern.permute.xlu0 0
        %528 = vperm.xlu0 %527, %v514
        %v529 = vpop.permute.xlu0 %528
        %532 = vset.pattern.permute.xlu0 0
        %533 = vperm.xlu0 %532, %v515
        %v534 = vpop.permute.xlu0 %533
        %v536 = vadd.f32 %v504, %v519
        %v537 = vadd.f32 %v505, %v519
        %v538 = vadd.f32 %v506, %v524
        %v539 = vadd.f32 %v507, %v524
        %v540 = vadd.f32 %v508, %v529
        %v541 = vadd.f32 %v509, %v529
        %v542 = vadd.f32 %v510, %v534
        %v543 = vadd.f32 %v511, %v534
        %v544 = vmax.f32 %v536, 0.0
        %v545 = vmax.f32 %v537, 0.0
        %v546 = vmax.f32 %v538, 0.0
        %v547 = vmax.f32 %v539, 0.0
        %v548 = vmax.f32 %v540, 0.0
        %v549 = vmax.f32 %v541, 0.0
        %v550 = vmax.f32 %v542, 0.0
        %v551 = vmax.f32 %v543, 0.0
        %v552 = vld [vmem:[%s3] sm:$0xf]
        %v553 = vld [vmem:[%s4] sm:$0xf]
        %555 = vset.pattern.permute.xlu0 0
        %556 = vperm.xlu0 %555, %v553
        %v557 = vpop.permute.xlu0 %556
        %vm559 = vcmask 261120
        %v561 = vsel %vm559, %v552, 0
        %563 = vmatprep.subr.mxu0 %v545
        %564 = vmatpush1.msra.mxu0 %v544
        %565 = vmatprep.subr.mxu0 %v547
        %566 = vmatpush1.msra.mxu0 %v546
        %567 = vmatprep.subr.mxu0 %v549
        %568 = vmatpush1.msra.mxu0 %v548
        %569 = vmatprep.subr.mxu0 %v551
        %570 = vmatpush1.msra.mxu0 %v550
        %571 = vmatprep.subr.mxu0 0.0
        %572 = vmatpush1.msra.mxu0 0.0
        %573 = vmatprep.subr.mxu0 0.0
        %574 = vmatpush1.msra.mxu0 0.0
        %575 = vmatprep.subr.mxu0 0.0
        %576 = vmatpush1.msra.mxu0 0.0
        %577 = vmatprep.subr.mxu0 0.0
        %578 = vmatpush1.msra.mxu0 0.0
        %579 = vmatprep.subr.mxu0 0.0
        %580 = vmatpush1.msra.mxu0 0.0
        %581 = vmatprep.subr.mxu0 0.0
        %582 = vmatpush1.msra.mxu0 0.0
        %583 = vmatprep.subr.mxu0 0.0
        %584 = vmatpush1.msra.mxu0 0.0
        %585 = vmatprep.subr.mxu0 0.0
        %586 = vmatpush1.msra.mxu0 0.0
        %587 = vmatprep.subr.mxu0 0.0
        %588 = vmatpush1.msra.mxu0 0.0
        %589 = vmatprep.subr.mxu0 0.0
        %590 = vmatpush1.msra.mxu0 0.0
        %591 = vmatprep.subr.mxu0 0.0
        %592 = vmatpush1.msra.mxu0 0.0
        %593 = vmatprep.subr.mxu0 0.0
        %594 = vmatpush1.msra.mxu0 0.0
        %595 = vmatprep.subr.mxu0 0.0
        %596 = vmatpush1.msra.mxu0 0.0
        %597 = vmatprep.subr.mxu0 0.0
        %598 = vmatpush1.msra.mxu0 0.0
        %599 = vmatprep.subr.mxu0 0.0
        %600 = vmatpush1.msra.mxu0 0.0
        %601 = vmatprep.subr.mxu0 0.0
        %602 = vmatpush1.msra.mxu0 0.0
        %603 = vmatprep.subr.mxu0 0.0
        %604 = vmatpush1.msra.mxu0 0.0
        %605 = vmatprep.subr.mxu0 0.0
        %606 = vmatpush1.msra.mxu0 0.0
        %607 = vmatprep.subr.mxu0 0.0
        %608 = vmatpush1.msra.mxu0 0.0
        %609 = vmatprep.subr.mxu0 0.0
        %610 = vmatpush1.msra.mxu0 0.0
        %611 = vmatprep.subr.mxu0 0.0
        %612 = vmatpush1.msra.mxu0 0.0
        %613 = vmatprep.subr.mxu0 0.0
        %614 = vmatpush1.msra.mxu0 0.0
        %615 = vmatprep.subr.mxu0 0.0
        %616 = vmatpush1.msra.mxu0 0.0
        %617 = vmatprep.subr.mxu0 0.0
        %618 = vmatpush1.msra.mxu0 0.0
        %619 = vmatprep.subr.mxu0 0.0
        %620 = vmatpush1.msra.mxu0 0.0
        %621 = vmatprep.subr.mxu0 0.0
        %622 = vmatpush1.msra.mxu0 0.0
        %623 = vmatprep.subr.mxu0 0.0
        %624 = vmatpush1.msra.mxu0 0.0
        %625 = vmatprep.subr.mxu0 0.0
        %626 = vmatpush1.msra.mxu0 0.0
        %627 = vmatprep.mubr.f32.mxu0 0.0
        %628 = vmatmul.mubr.f32.gmra.mrb[0].mxu0 %v561
        %v629 = vpop.f32.mrb[0].mxu0
        %v630 = vadd.f32 %v557, %v629
        %v631 = vpop.f32.mrb[0].mxu0
        %v632 = vadd.f32 %v557, %v631
        %633 = vdwg.mxu0
        %v636 = vcombine.low %v630, %v632
        %638 = vst [vmem:[%s326] sm:$0xff] %v636
        %v639 = vld [vmem:[%s351] sm:$0xff]
        %v641 = vcombine.high %v639, %v639
        %v643 = vsub.f32 %v630, %v639
        %v644 = vsub.f32 %v632, %v641
        %v645 = vmul.f32 %v643, %v643
        %v646 = vmul.f32 %v644, %v644
        %vm647 = vcmask 1043456
        %v648 = vsel %vm647, %v645, 0.0
        %v649 = vsel %vm647, %v646, 0.0
        %v650 = vadd.f32 %v648, %v649
        %651 = vadd.xlane.f32.xlu0 %v650
        %v652 = vpop.xlane.xlu0 %651
        %v653 = vld [vmem:[#allocation2] sm:$0x1]
        %v654 = vsel %vm647, %v652, 0.0
        %v655 = vrot.slane %v654, 4
        %v656 = vadd.f32 %v654, %v655
        %v657 = vrot.slane %v656, 2
        %v658 = vadd.f32 %v656, %v657
        %v659 = vrot.slane %v658, 1
        %v660 = vadd.f32 %v658, %v659
        %v661 = vadd.f32 %v653, %v660
        %vm662 = vcmask 0
        %663 = vst.msk [vmem:[#allocation2] sm:$0x1] %vm662, %v661
        // Predicated region
        $region49: #{tpu_custom_call.1} parent=43 // pred_check
          %p664 = pneg %p354
        $region50: #{tpu_custom_call.1} parent=43 // pred_check_branch
          %666 = sbr.rel (%p664) target = $region52
        $region51: #{tpu_custom_call.1} parent=43 // pred_region
          %v667 = vld [vmem:[#allocation2] sm:$0x1]
          %v668 = vmul.f32 %v667, 0.0009765625
          %670 = vset.pattern.permute.xlu0 0
          %671 = vperm.xlu0 %670, %v668
          %v672 = vpop.permute.xlu0 %671
          %v674 = vlaneseq
          %v675 = vshrl.u32 %v674, 7
          %v676 = vsub.s32 0, %v675
          %v677 = vrot.slane %v672, %v676
          %678 = vst [vmem:[%s332] sm:$0x1] %v677
        $region52: #{tpu_custom_call.1} parent=43 // pred_fallthru
          _
        %s679 = sand.u32 %s187, 1
        %s680 = scalar_lea.sflag [#allocation4], %s679
        %s681 = sand.u32 %s187, 1
        %s682 = smul.addr %s681, 8
        %s683 = scalar_lea.vmem [#allocation3], %s682
        %s684 = sand.u32 %s213, 1
        %s685 = scalar_lea.sflag [#allocation6], %s684
        %s686 = sand.u32 %s213, 1
        %s687 = scalar_lea.vmem [#allocation5], %s686
        // Predicated region
        $region53: #{tpu_custom_call.1} parent=43 // pred_check
          %p688 = pneg %p197
        $region54: #{tpu_custom_call.1} parent=43 // pred_check_branch
          %690 = sbr.rel (%p688) target = $region56
        $region55: #{tpu_custom_call.1} parent=43 // pred_region
          %s691 = smul.u32 2, %s30
          %s693 = ssub.s32 128, 128
          %694 = vsyncadd %s680, %s693
          %s695 = smul.addr %s29, 2
          %s696 = sadd.s32 %s691, %s695
          %s697 = smul.addr %s696, 64
          %s698 = scalar_lea.hbm %s6, %s697
          %s700 = sshll.u32 %s683, 4
          %s701 = int_to_ptr.vmem [resolvable:$true] %s700
          %703 = dma.vmem_to_hbm [thread:$0]  %s701, 128, %s698, %s680
        $region56: #{tpu_custom_call.1} parent=43 // pred_fallthru
          _
        // Predicated region
        $region57: #{tpu_custom_call.1} parent=43 // pred_check
          %p704 = pneg %p223
        $region58: #{tpu_custom_call.1} parent=43 // pred_check_branch
          %706 = sbr.rel (%p704) target = $region60
        $region59: #{tpu_custom_call.1} parent=43 // pred_region
          %s708 = ssub.s32 16, 16
          %709 = vsyncadd %s685, %s708
          %s710 = smul.addr %s29, 16
          %s711 = scalar_lea.hbm %s7, %s710
          %s713 = sshll.u32 %s687, 4
          %s714 = int_to_ptr.vmem [resolvable:$true] %s713
          %716 = dma.vmem_to_hbm [thread:$0]  %s714, 16, %s711, %s685
        $region60: #{tpu_custom_call.1} parent=43 // pred_fallthru
          _
      $region44: #{tpu_custom_call.1} parent=5 // pred_fallthru
        _
      %p717 = scmp.le.s32.totalorder 2, %s20
      // Predicated region
      $region61: #{tpu_custom_call.1} parent=5 // pred_check
        %p718 = pneg %p717
      $region62: #{tpu_custom_call.1} parent=5 // pred_check_branch
        %720 = sbr.rel (%p718) target = $region64
      $region63: #{tpu_custom_call.1} parent=5 // pred_region
        %s721 = ssub.s32 %s20, 2
        // Predicated region
        $region65: #{tpu_custom_call.1} parent=63 // pred_check
          %p722 = pneg %p203
        $region66: #{tpu_custom_call.1} parent=63 // pred_check_branch
          %724 = sbr.rel (%p722) target = $region68
        $region67: #{tpu_custom_call.1} parent=63 // pred_region
          %s725 = sand.u32 %s188, 1
          %s726 = scalar_lea.sflag [#allocation4], %s725
          %s727 = sand.u32 %s188, 1
          %s728 = smul.addr %s727, 8
          %s729 = scalar_lea.vmem [#allocation3], %s728
          %730 = dma.done %s726, 128
        $region68: #{tpu_custom_call.1} parent=63 // pred_fallthru
          _
        // Predicated region
        $region69: #{tpu_custom_call.1} parent=63 // pred_check
          %p731 = pneg %p229
        $region70: #{tpu_custom_call.1} parent=63 // pred_check_branch
          %733 = sbr.rel (%p731) target = $region72
        $region71: #{tpu_custom_call.1} parent=63 // pred_region
          %s734 = sand.u32 %s214, 1
          %s735 = scalar_lea.sflag [#allocation6], %s734
          %s736 = sand.u32 %s214, 1
          %s737 = scalar_lea.vmem [#allocation5], %s736
          %738 = dma.done %s735, 16
        $region72: #{tpu_custom_call.1} parent=63 // pred_fallthru
          _
      $region64: #{tpu_custom_call.1} parent=5 // pred_fallthru
        _
    $region6: #{tpu_custom_call.1} parent=1 // loop_footer
      %s24 = sadd.s32 1, %s20
    $region7: #{tpu_custom_call.1} parent=1 // loop_footer_branch
      %19 = sbr.rel target = $region3
    $region8: #{tpu_custom_call.1} parent=1 // loop_exit
      _
    %739 = vsyncpa [#allocation4], 1
    %s740 = scalar_lea.sflag [#allocation4], 1
    %741 = vsyncpa %s740, 1
    %742 = vsyncpa [#allocation6], 1
    %s743 = scalar_lea.sflag [#allocation6], 1
    %744 = vsyncpa %s743, 1

</llo_original>
